<compile_context>
chip_gen: v7x
topology: tpu7x:2x2x1
jax: 0.10.0
libtpu: 0.0.40
codegen_flags: <defaults>
</compile_context>

<pallas_src>
import jax
import jax.numpy as jnp
from jax.experimental import pallas as pl
from jax.experimental.pallas import tpu as pltpu

INFINITY_NUMBER = 1e12  # same constant trankit uses for masked_fill


def _linear_attention_kernel(inp_ref, ctx_ref, mask_ref, wa_ref,
                             wo_wc_ref, wo_in_ref, h_ref, attn_ref):
    ctx = ctx_ref[...]                                    # (Bt, L, D) native dtype
    x = inp_ref[...].astype(jnp.float32)                  # (Bt, D)
    wa = wa_ref[...].astype(jnp.float32)                  # (8, D): rows [wa_u, wa_v, wa_uv, 0..]
    wa_u = wa[0:1, :]
    wa_v = wa[1:2, :]
    wa_uv = wa[2:3, :]

    # ---- attention scores: W_a · [u; v; u*v], decomposed & folded ----
    # u·wa_u  +  v·wa_v + (u*v)·wa_uv  ==  u·wa_u  +  v·(wa_v + u*wa_uv)
    t1 = jnp.sum(x * wa_u, axis=-1, keepdims=True)        # (Bt, 1)
    w_b = wa_v + x * wa_uv                                 # (Bt, D)  single pass
    prod = ctx * w_b.astype(ctx.dtype)[:, None, :]         # (Bt, L, D) stays in ctx dtype
    scores = t1 + jnp.sum(prod, axis=-1).astype(jnp.float32)   # (Bt, L)

    # optional boolean mask: masked_fill_(mask, -INFINITY_NUMBER)
    scores = jnp.where(mask_ref[...] != 0, -INFINITY_NUMBER, scores)

    # ---- softmax over L ----
    m = jnp.max(scores, axis=-1, keepdims=True)
    e = jnp.exp(scores - m)
    denom = jnp.sum(e, axis=-1, keepdims=True)
    r = pl.reciprocal(denom, approx=True)                  # EUP slot
    r = r * (2.0 - denom * r)                              # one Newton step -> ~f32 accuracy
    attn = e * r                                           # (Bt, L) f32
    attn_ref[...] = attn.astype(attn_ref.dtype)

    # ---- weighted context on the MXU: bmm((Bt,1,L), (Bt,L,D)) -> (Bt,1,D) ----
    attn3 = attn.astype(ctx.dtype)[:, None, :]
    wc = jnp.einsum("bql,bld->bqd", attn3, ctx,
                    preferred_element_type=jnp.float32)[:, 0, :]   # (Bt, D) f32

    # ---- h_tilde = tanh([wc ; x] @ W_o^T) = tanh(wc @ Wo_wc + x @ Wo_in) ----
    h = jnp.tanh(
        jnp.dot(wc, wo_wc_ref[...].astype(jnp.float32),
                preferred_element_type=jnp.float32)
        + jnp.dot(x, wo_in_ref[...].astype(jnp.float32),
                  preferred_element_type=jnp.float32))
    h_ref[...] = h.astype(h_ref.dtype)


def prepare_weights(w_attn, w_out):
    """One-time weight preprocessing, hoisted out of the per-call path."""
    D = w_out.shape[0]
    assert w_attn.shape == (1, 3 * D) and w_out.shape == (D, 2 * D)
    wa = w_attn.reshape(3, D)                              # rows: wa_u, wa_v, wa_uv
    wa_packed = jnp.concatenate(
        [wa, jnp.zeros((5, D), wa.dtype)], axis=0)         # (8, D): one sublane-aligned DMA
    wo_wc = jnp.transpose(w_out[:, :D])                    # (D, D) — weighted-context part
    wo_in = jnp.transpose(w_out[:, D:])                    # (D, D) — input part
    return wa_packed, wo_wc, wo_in


def linear_attention(inp, ctx, wa_packed, wo_wc, wo_in, mask=None,
                     *, block_b=None, attn_only=False):
    """inp: (B, D), ctx: (B, L, D); weights from prepare_weights()."""
    B, D = inp.shape
    _, L, _ = ctx.shape

    # mask as 0/1 float (True -> masked_fill with -INFINITY_NUMBER)
    if mask is None:
        maskf = jnp.zeros((B, L), jnp.float32)
    else:
        maskf = mask.astype(jnp.float32)

    # Batch tile: keep the double-buffered ctx tile ~<= 4 MiB so it fits v7x's
    # 64 MiB VMEM (32 MiB scoped default) while amortizing per-step overhead.
    if block_b is None:
        ctx_row_bytes = L * D * ctx.dtype.itemsize
        tgt = max(1, (4 * 1024 * 1024) // ctx_row_bytes)
        block_b = max(8, min(256, (tgt // 8) * 8))
    if B <= block_b:
        bt, bp = B, B                                      # full-dim block (always legal)
    else:
        bt = block_b                                       # multiple of 8 (sublane rule)
        bp = ((B + bt - 1) // bt) * bt
    if bp != B:                                            # pad batch to a tile multiple
        pad = bp - B
        inp = jnp.concatenate([inp, jnp.zeros((pad, D), inp.dtype)], axis=0)
        ctx = jnp.concatenate([ctx, jnp.zeros((pad, L, D), ctx.dtype)], axis=0)
        maskf = jnp.concatenate([maskf, jnp.zeros((pad, L), maskf.dtype)], axis=0)

    grid = (bp // bt,)
    in_specs = [
        pl.BlockSpec((bt, D), lambda i: (i, 0)),           # input tile
        pl.BlockSpec((bt, L, D), lambda i: (i, 0, 0)),     # context tile (dominant stream)
        pl.BlockSpec((bt, L), lambda i: (i, 0)),           # mask tile
        pl.BlockSpec((8, D), lambda i: (0, 0)),            # packed W_a rows (resident)
        pl.BlockSpec((D, D), lambda i: (0, 0)),            # W_o wc-part (resident)
        pl.BlockSpec((D, D), lambda i: (0, 0)),            # W_o input-part (resident)
    ]
    out_specs = (
        pl.BlockSpec((bt, D), lambda i: (i, 0)),
        pl.BlockSpec((bt, L), lambda i: (i, 0)),
    )
    out_shape = (jax.ShapeDtypeStruct((bp, D), inp.dtype),
                 jax.ShapeDtypeStruct((bp, L), jnp.float32))   # attn returned in f32

    h_tilde, attn = pl.pallas_call(
        _linear_attention_kernel,
        grid=grid,
        in_specs=in_specs,
        out_specs=out_specs,
        out_shape=out_shape,
        compiler_params=pltpu.CompilerParams(
            dimension_semantics=("parallel",)),            # shard batch across TCs (v7x)
    )(inp, ctx, maskf, wa_packed, wo_wc, wo_in)

    if bp != B:
        h_tilde = h_tilde[:B]
        attn = attn[:B]
    if attn_only:
        return attn
    return h_tilde, attn


def _reference(inp, ctx, w_attn, w_out, mask=None):
    B, L, D = ctx.shape
    u = jnp.broadcast_to(inp[:, None, :], (B, L, D)).reshape(-1, D)
    v = ctx.reshape(-1, D)
    attn_in = jnp.concatenate([u, v, u * v], axis=1)
    scores = (attn_in @ w_attn.T).reshape(B, L)
    if mask is not None:
        scores = jnp.where(mask, -INFINITY_NUMBER, scores)
    attn = jax.nn.softmax(scores, axis=1)
    wc = jnp.einsum("bl,bld->bd", attn, ctx)
    h = jnp.tanh(jnp.concatenate([wc, inp], axis=1) @ w_out.T)
    return h, attn


if __name__ == "__main__":
    B, L, D = 2, 8, 32
    key = jax.random.PRNGKey(0)
    k1, k2, k3, k4, k5 = jax.random.split(key, 5)

    inp = jax.random.normal(k1, (B, D), dtype=jnp.float32)
    ctx = jax.random.normal(k2, (B, L, D), dtype=jnp.float32)
    # nn.Linear(dim*3, 1, bias=False) -> (1, 3D); nn.Linear(dim*2, dim, bias=False) -> (D, 2D)
    w_attn = (jax.random.normal(k3, (1, 3 * D), dtype=jnp.float32)
              / jnp.sqrt(3.0 * D))
    w_out = (jax.random.normal(k4, (D, 2 * D), dtype=jnp.float32)
             / jnp.sqrt(2.0 * D))
    mask = jax.random.bernoulli(k5, 0.25, (B, L))

    wa_packed, wo_wc, wo_in = prepare_weights(w_attn, w_out)

    # unmasked path
    h_tilde, attn = linear_attention(inp, ctx, wa_packed, wo_wc, wo_in)
    jax.block_until_ready((h_tilde, attn))
    h_ref, attn_ref = _reference(inp, ctx, w_attn, w_out)
    assert jnp.allclose(h_tilde, h_ref, atol=1e-4, rtol=1e-4)
    assert jnp.allclose(attn, attn_ref, atol=1e-4, rtol=1e-4)

    # masked path (exercises masked_fill_ with -INFINITY_NUMBER)
    h_m, attn_m = linear_attention(inp, ctx, wa_packed, wo_wc, wo_in, mask=mask)
    jax.block_until_ready((h_m, attn_m))
    h_ref_m, attn_ref_m = _reference(inp, ctx, w_attn, w_out, mask=mask)
    assert jnp.allclose(h_m, h_ref_m, atol=1e-4, rtol=1e-4)
    assert jnp.allclose(attn_m, attn_ref_m, atol=1e-4, rtol=1e-4)

    print("KERNEL_OK")
</pallas_src>

<mosaic_0001>
module attributes {stable_mosaic.version = 11 : i64} {
  func.func @_linear_attention_kernel(%arg0: i32, %arg1: memref<2x32xf32, #tpu.memory_space<vmem>>, %arg2: memref<2x8x32xf32, #tpu.memory_space<vmem>>, %arg3: memref<2x8xf32, #tpu.memory_space<vmem>>, %arg4: memref<8x32xf32, #tpu.memory_space<vmem>>, %arg5: memref<32x32xf32, #tpu.memory_space<vmem>>, %arg6: memref<32x32xf32, #tpu.memory_space<vmem>>, %arg7: memref<2x32xf32, #tpu.memory_space<vmem>>, %arg8: memref<2x8xf32, #tpu.memory_space<vmem>>) attributes {dimension_semantics = [#tpu.dimension_semantics<parallel>], iteration_bounds = array<i64: 1>, scalar_prefetch = 0 : i64, scratch_operands = 0 : i64, tpu.core_type = #tpu.core_type<tc>, window_params = [{transform_indices = @transform_0, window_bounds = array<i64: 2, 32>}, {transform_indices = @transform_1, window_bounds = array<i64: 2, 8, 32>}, {transform_indices = @transform_2, window_bounds = array<i64: 2, 8>}, {pipeline_mode = #tpu.pipeline_mode<synchronous>, transform_indices = @transform_3, window_bounds = array<i64: 8, 32>}, {pipeline_mode = #tpu.pipeline_mode<synchronous>, transform_indices = @transform_4, window_bounds = array<i64: 32, 32>}, {pipeline_mode = #tpu.pipeline_mode<synchronous>, transform_indices = @transform_5, window_bounds = array<i64: 32, 32>}, {transform_indices = @transform_6, window_bounds = array<i64: 2, 32>}, {transform_indices = @transform_7, window_bounds = array<i64: 2, 8>}]} {
    %c0 = arith.constant 0 : index
    %c0_0 = arith.constant 0 : index
    %c0_1 = arith.constant 0 : index
    %0 = vector.load %arg2[%c0, %c0_0, %c0_1] : memref<2x8x32xf32, #tpu.memory_space<vmem>>, vector<2x8x32xf32>
    %c0_2 = arith.constant 0 : index
    %c0_3 = arith.constant 0 : index
    %1 = vector.load %arg1[%c0_2, %c0_3] : memref<2x32xf32, #tpu.memory_space<vmem>>, vector<2x32xf32>
    %c0_4 = arith.constant 0 : index
    %c0_5 = arith.constant 0 : index
    %2 = vector.load %arg4[%c0_4, %c0_5] : memref<8x32xf32, #tpu.memory_space<vmem>>, vector<8x32xf32>
    %3 = vector.extract_strided_slice %2 {offsets = [0, 0], sizes = [1, 32], strides = [1, 1]} : vector<8x32xf32> to vector<1x32xf32>
    %4 = vector.extract_strided_slice %2 {offsets = [1, 0], sizes = [1, 32], strides = [1, 1]} : vector<8x32xf32> to vector<1x32xf32>
    %5 = vector.extract_strided_slice %2 {offsets = [2, 0], sizes = [1, 32], strides = [1, 1]} : vector<8x32xf32> to vector<1x32xf32>
    %6 = vector.broadcast %3 : vector<1x32xf32> to vector<2x32xf32>
    %7 = arith.mulf %1, %6 : vector<2x32xf32>
    %cst = arith.constant dense<0.000000e+00> : vector<2xf32>
    %8 = vector.multi_reduction <add>, %7, %cst [1] : vector<2x32xf32> to vector<2xf32>
    %9 = vector.shape_cast %8 : vector<2xf32> to vector<2x1xf32>
    %10 = vector.broadcast %5 : vector<1x32xf32> to vector<2x32xf32>
    %11 = arith.mulf %1, %10 : vector<2x32xf32>
    %12 = vector.broadcast %4 : vector<1x32xf32> to vector<2x32xf32>
    %13 = arith.addf %12, %11 : vector<2x32xf32>
    %14 = vector.shape_cast %13 : vector<2x32xf32> to vector<2x1x32xf32>
    %15 = vector.broadcast %14 : vector<2x1x32xf32> to vector<2x8x32xf32>
    %16 = arith.mulf %0, %15 : vector<2x8x32xf32>
    %cst_6 = arith.constant dense<0.000000e+00> : vector<2x8xf32>
    %17 = vector.multi_reduction <add>, %16, %cst_6 [2] : vector<2x8x32xf32> to vector<2x8xf32>
    %18 = vector.broadcast %9 : vector<2x1xf32> to vector<2x8xf32>
    %19 = arith.addf %18, %17 : vector<2x8xf32>
    %c0_7 = arith.constant 0 : index
    %c0_8 = arith.constant 0 : index
    %20 = vector.load %arg3[%c0_7, %c0_8] : memref<2x8xf32, #tpu.memory_space<vmem>>, vector<2x8xf32>
    %cst_9 = arith.constant 0.000000e+00 : f32
    %21 = vector.broadcast %cst_9 : f32 to vector<2x8xf32>
    %22 = arith.cmpf one, %20, %21 : vector<2x8xf32>
    %cst_10 = arith.constant -9.99999995E+11 : f32
    %23 = vector.broadcast %cst_10 : f32 to vector<2x8xf32>
    %24 = arith.select %22, %23, %19 : vector<2x8xi1>, vector<2x8xf32>
    %cst_11 = arith.constant dense<0xFF800000> : vector<2xf32>
    %25 = vector.multi_reduction <maximumf>, %24, %cst_11 [1] : vector<2x8xf32> to vector<2xf32>
    %26 = vector.shape_cast %25 : vector<2xf32> to vector<2x1xf32>
    %27 = vector.broadcast %26 : vector<2x1xf32> to vector<2x8xf32>
    %28 = arith.subf %24, %27 : vector<2x8xf32>
    %29 = math.exp %28 : vector<2x8xf32>
    %cst_12 = arith.constant dense<0.000000e+00> : vector<2xf32>
    %30 = vector.multi_reduction <add>, %29, %cst_12 [1] : vector<2x8xf32> to vector<2xf32>
    %31 = vector.shape_cast %30 : vector<2xf32> to vector<2x1xf32>
    %32 = tpu.reciprocal %31 {approx = true} : vector<2x1xf32> -> vector<2x1xf32>
    %33 = arith.mulf %31, %32 : vector<2x1xf32>
    %cst_13 = arith.constant 2.000000e+00 : f32
    %34 = vector.broadcast %cst_13 : f32 to vector<2x1xf32>
    %35 = arith.subf %34, %33 : vector<2x1xf32>
    %36 = arith.mulf %32, %35 : vector<2x1xf32>
    %37 = vector.broadcast %36 : vector<2x1xf32> to vector<2x8xf32>
    %38 = arith.mulf %29, %37 : vector<2x8xf32>
    %c0_14 = arith.constant 0 : index
    %c0_15 = arith.constant 0 : index
    %39 = vector.load %arg8[%c0_14, %c0_15] : memref<2x8xf32, #tpu.memory_space<vmem>>, vector<2x8xf32>
    tpu.vector_store %arg8[%c0_14, %c0_15], %38 {strides = array<i32>} : memref<2x8xf32, #tpu.memory_space<vmem>>, vector<2x8xf32>,
    %40 = vector.shape_cast %38 : vector<2x8xf32> to vector<2x1x8xf32>
    "tpu.trace_start"() <{level = 10 : i32, message = "bql,bld->bqd"}> : () -> ()
    %cst_16 = arith.constant dense<0.000000e+00> : vector<2x1x32xf32>
    %41 = tpu.matmul %40, %0, %cst_16 {dimension_numbers = #tpu.dot_dimension_numbers<[2], [1], [1], [2], [0, 0, 0, 1, 1, 2], [0], [0]>} : vector<2x1x8xf32>, vector<2x8x32xf32>, vector<2x1x32xf32> -> vector<2x1x32xf32>
    "tpu.trace_stop"() : () -> ()
    %42 = vector.shape_cast %41 : vector<2x1x32xf32> to vector<2x32xf32>
    %c0_17 = arith.constant 0 : index
    %c0_18 = arith.constant 0 : index
    %43 = vector.load %arg5[%c0_17, %c0_18] : memref<32x32xf32, #tpu.memory_space<vmem>>, vector<32x32xf32>
    %cst_19 = arith.constant dense<0.000000e+00> : vector<2x32xf32>
    %44 = tpu.matmul %42, %43, %cst_19 {dimension_numbers = #tpu.dot_dimension_numbers<[1], [0], [0], [1], [0, 0, 1, 1], [], []>} : vector<2x32xf32>, vector<32x32xf32>, vector<2x32xf32> -> vector<2x32xf32>
    %c0_20 = arith.constant 0 : index
    %c0_21 = arith.constant 0 : index
    %45 = vector.load %arg6[%c0_20, %c0_21] : memref<32x32xf32, #tpu.memory_space<vmem>>, vector<32x32xf32>
    %cst_22 = arith.constant dense<0.000000e+00> : vector<2x32xf32>
    %46 = tpu.matmul %1, %45, %cst_22 {dimension_numbers = #tpu.dot_dimension_numbers<[1], [0], [0], [1], [0, 0, 1, 1], [], []>} : vector<2x32xf32>, vector<32x32xf32>, vector<2x32xf32> -> vector<2x32xf32>
    %47 = arith.addf %44, %46 : vector<2x32xf32>
    %48 = math.tanh %47 : vector<2x32xf32>
    %c0_23 = arith.constant 0 : index
    %c0_24 = arith.constant 0 : index
    %49 = vector.load %arg7[%c0_23, %c0_24] : memref<2x32xf32, #tpu.memory_space<vmem>>, vector<2x32xf32>
    tpu.vector_store %arg7[%c0_23, %c0_24], %48 {strides = array<i32>} : memref<2x32xf32, #tpu.memory_space<vmem>>, vector<2x32xf32>,
    return
  }
  func.func @transform_0(%arg0: i32) -> (i32, i32) {
    %c0_i32 = arith.constant 0 : i32
    %c0_i32_0 = arith.constant 0 : i32
    return %arg0, %c0_i32 : i32, i32
  }
  func.func @transform_1(%arg0: i32) -> (i32, i32, i32) {
    %c0_i32 = arith.constant 0 : i32
    %c0_i32_0 = arith.constant 0 : i32
    %c0_i32_1 = arith.constant 0 : i32
    return %arg0, %c0_i32, %c0_i32_0 : i32, i32, i32
  }
  func.func @transform_2(%arg0: i32) -> (i32, i32) {
    %c0_i32 = arith.constant 0 : i32
    %c0_i32_0 = arith.constant 0 : i32
    return %arg0, %c0_i32 : i32, i32
  }
  func.func @transform_3(%arg0: i32) -> (i32, i32) {
    %c0_i32 = arith.constant 0 : i32
    %c0_i32_0 = arith.constant 0 : i32
    %c0_i32_1 = arith.constant 0 : i32
    return %c0_i32, %c0_i32_0 : i32, i32
  }
  func.func @transform_4(%arg0: i32) -> (i32, i32) {
    %c0_i32 = arith.constant 0 : i32
    %c0_i32_0 = arith.constant 0 : i32
    %c0_i32_1 = arith.constant 0 : i32
    return %c0_i32, %c0_i32_0 : i32, i32
  }
  func.func @transform_5(%arg0: i32) -> (i32, i32) {
    %c0_i32 = arith.constant 0 : i32
    %c0_i32_0 = arith.constant 0 : i32
    %c0_i32_1 = arith.constant 0 : i32
    return %c0_i32, %c0_i32_0 : i32, i32
  }
  func.func @transform_6(%arg0: i32) -> (i32, i32) {
    %c0_i32 = arith.constant 0 : i32
    %c0_i32_0 = arith.constant 0 : i32
    return %arg0, %c0_i32 : i32, i32
  }
  func.func @transform_7(%arg0: i32) -> (i32, i32) {
    %c0_i32 = arith.constant 0 : i32
    %c0_i32_0 = arith.constant 0 : i32
    return %arg0, %c0_i32 : i32, i32
  }
}

</mosaic_0001>

<llo_original>
// kernel: tpu_custom_call.1
$region0: #{tpu_custom_call.1}
  #allocation0 [shape = 'u32[]', space=smem, size = 0x4, offset = 0x4, fixed_abs, tag = 'smem constant byte address 0x4 - core index']
  #allocation1 [shape = 'u32[144,128]{1,0:T(1,128)}', space=vmem, size = 0x12000, scoped, tag = 'internal scratch']
  %s0 = inlined_call_operand.hbm [shape: f32[2,32], index: 0, kind: input, shape index: {}]
  %s1 = inlined_call_operand.hbm [shape: f32[2,8,32], index: 1, kind: input, shape index: {}]
  %s2 = inlined_call_operand.vmem [shape: f32[2,8], index: 2, kind: input, shape index: {}]
  %s3 = inlined_call_operand.vmem [shape: f32[8,32], index: 3, kind: input, shape index: {}]
  %s4 = inlined_call_operand.hbm [shape: f32[32,32], index: 4, kind: input, shape index: {}]
  %s5 = inlined_call_operand.hbm [shape: f32[32,32], index: 5, kind: input, shape index: {}]
  %s6 = inlined_call_operand.hbm [shape: f32[2,32], index: 6, kind: output, shape index: {0}]
  %s7 = inlined_call_operand.hbm [shape: f32[2,8], index: 7, kind: output, shape index: {1}]
  %8 = xla_tuple %s6, %s7
  %s9 = sld [smem:[#allocation0]]
  $region58: #{tpu_custom_call.1} parent=0
    _
  %s11 = ssub.s32 1, %s9
  %s12 = scalar_select 0, %s11, %s9
  $region1: #{tpu_custom_call.1} parent=0
    #allocation2 [shape = 'u8[1024]{0}', space=vmem, size = 0x400, scoped, tag = 'input window, operand 0, single buffered']
    #allocation3 [shape = 's32[1]{0}', space=sflag, size = 0x4, scoped, tag = 'scoped memory for tpu_custom_call.1']
    #allocation4 [shape = 's32[1]{0}', space=sflag, size = 0x4, scoped, tag = 'scoped memory for tpu_custom_call.1']
    #allocation5 [shape = 'u8[8192]{0}', space=vmem, size = 0x2000, scoped, tag = 'input window, operand 1, single buffered']
    #allocation6 [shape = 's32[1]{0}', space=sflag, size = 0x4, scoped, tag = 'scoped memory for tpu_custom_call.1']
    #allocation7 [shape = 'u8[16384]{0}', space=vmem, size = 0x4000, scoped, tag = 'input window, operand 4, single buffered']
    #allocation8 [shape = 'u8[16384]{0}', space=vmem, size = 0x4000, scoped, tag = 'input window, operand 5, single buffered']
    #allocation9 [shape = 's32[1]{0}', space=sflag, size = 0x4, scoped, tag = 'scoped memory for tpu_custom_call.1']
    #allocation10 [shape = 'u8[1024]{0}', space=vmem, size = 0x400, scoped, tag = 'output window, operand 0, single buffered']
    #allocation11 [shape = 'u8[1024]{0}', space=vmem, size = 0x400, scoped, tag = 'output window, operand 1, single buffered']
    #allocation12 [shape = 's32[1]{0}', space=sflag, size = 0x4, scoped, tag = 'scoped memory for tpu_custom_call.1']
    %13 = vsyncpa [#allocation3], 0
    %14 = vsyncpa [#allocation6], 0
    %15 = vsyncpa [#allocation9], 0
    %16 = vsyncpa [#allocation4], 0
    %17 = vsyncpa [#allocation12], 0
    // Predicated region
    $region2: #{tpu_custom_call.1} parent=1 // pred_check
      _
    $region3: #{tpu_custom_call.1} parent=1 // pred_check_branch
      %19 = sbr.rel (0) target = $region5
    $region4: #{tpu_custom_call.1} parent=1 // pred_region
      %s21 = ssub.s32 32, 32
      %22 = vsyncadd [#allocation3], %s21
      %s24 = sshll.u32 [#allocation2], 4
      %s25 = int_to_ptr.vmem [resolvable:$true] %s24
      %27 = dma.hbm_to_vmem [thread:$0]  %s0, 32, %s25, [#allocation3]
    $region5: #{tpu_custom_call.1} parent=1 // pred_fallthru
      _
    // Predicated region
    $region6: #{tpu_custom_call.1} parent=1 // pred_check
      _
    $region7: #{tpu_custom_call.1} parent=1 // pred_check_branch
      %29 = sbr.rel (0) target = $region9
    $region8: #{tpu_custom_call.1} parent=1 // pred_region
      %s31 = ssub.s32 256, 256
      %32 = vsyncadd [#allocation6], %s31
      %s33 = sshll.u32 [#allocation5], 4
      %s34 = int_to_ptr.vmem [resolvable:$true] %s33
      %39 = dma.hbm_to_vmem [thread:$0]  %s1, 256, %s34, [#allocation6], 128, 128, 8
    $region9: #{tpu_custom_call.1} parent=1 // pred_fallthru
      _
    // Predicated region
    $region10: #{tpu_custom_call.1} parent=1 // pred_check
      _
    $region11: #{tpu_custom_call.1} parent=1 // pred_check_branch
      %41 = sbr.rel (0) target = $region13
    $region12: #{tpu_custom_call.1} parent=1 // pred_region
      _
    $region13: #{tpu_custom_call.1} parent=1 // pred_fallthru
      _
    // Predicated region
    $region14: #{tpu_custom_call.1} parent=1 // pred_check
      _
    $region15: #{tpu_custom_call.1} parent=1 // pred_check_branch
      %43 = sbr.rel (0) target = $region17
    $region16: #{tpu_custom_call.1} parent=1 // pred_region
      _
    $region17: #{tpu_custom_call.1} parent=1 // pred_fallthru
      _
    // Predicated region
    $region18: #{tpu_custom_call.1} parent=1 // pred_check
      _
    $region19: #{tpu_custom_call.1} parent=1 // pred_check_branch
      %45 = sbr.rel (0) target = $region21
    $region20: #{tpu_custom_call.1} parent=1 // pred_region
      %s47 = ssub.s32 512, 512
      %48 = vsyncadd [#allocation6], %s47
      %s49 = sshll.u32 [#allocation7], 4
      %s50 = int_to_ptr.vmem [resolvable:$true] %s49
      %55 = dma.hbm_to_vmem [thread:$0]  %s4, 512, %s50, [#allocation6], 128, 128, 8
    $region21: #{tpu_custom_call.1} parent=1 // pred_fallthru
      _
    // Predicated region
    $region22: #{tpu_custom_call.1} parent=1 // pred_check
      _
    $region23: #{tpu_custom_call.1} parent=1 // pred_check_branch
      %57 = sbr.rel (0) target = $region25
    $region24: #{tpu_custom_call.1} parent=1 // pred_region
      %s59 = ssub.s32 512, 512
      %60 = vsyncadd [#allocation9], %s59
      %s61 = sshll.u32 [#allocation8], 4
      %s62 = int_to_ptr.vmem [resolvable:$true] %s61
      %67 = dma.hbm_to_vmem [thread:$0]  %s5, 512, %s62, [#allocation9], 128, 128, 8
    $region25: #{tpu_custom_call.1} parent=1 // pred_fallthru
      _
    // Predicated region
    $region26: #{tpu_custom_call.1} parent=1 // pred_check
      _
    $region27: #{tpu_custom_call.1} parent=1 // pred_check_branch
      %69 = sbr.rel (0) target = $region29
    $region28: #{tpu_custom_call.1} parent=1 // pred_region
      %70 = dma.done [#allocation3], 32
    $region29: #{tpu_custom_call.1} parent=1 // pred_fallthru
      _
    // Predicated region
    $region30: #{tpu_custom_call.1} parent=1 // pred_check
      _
    $region31: #{tpu_custom_call.1} parent=1 // pred_check_branch
      %72 = sbr.rel (0) target = $region33
    $region32: #{tpu_custom_call.1} parent=1 // pred_region
      %73 = dma.done [#allocation6], 256
    $region33: #{tpu_custom_call.1} parent=1 // pred_fallthru
      _
    // Predicated region
    $region34: #{tpu_custom_call.1} parent=1 // pred_check
      _
    $region35: #{tpu_custom_call.1} parent=1 // pred_check_branch
      %75 = sbr.rel (0) target = $region37
    $region36: #{tpu_custom_call.1} parent=1 // pred_region
      %76 = dma.done [#allocation6], 512
    $region37: #{tpu_custom_call.1} parent=1 // pred_fallthru
      _
    // Predicated region
    $region38: #{tpu_custom_call.1} parent=1 // pred_check
      _
    $region39: #{tpu_custom_call.1} parent=1 // pred_check_branch
      %78 = sbr.rel (0) target = $region41
    $region40: #{tpu_custom_call.1} parent=1 // pred_region
      %79 = dma.done [#allocation9], 512
    $region41: #{tpu_custom_call.1} parent=1 // pred_fallthru
      _
    %v80 = vld [vmem:[#allocation5] sm:$0xff]
    %v81 = vld [vmem:[#allocation5 + $0x8] sm:$0xff]
    %v82 = vld [vmem:[#allocation2] sm:$0x3]
    %v83 = vld [vmem:[%s3] sm:$0xff]
    %v84 = vlaneseq
    %v85 = vshrl.u32 %v84, 7
    %v86 = vsub.s32 0, %v85
    %v87 = vrot.slane %v83, %v86
    %v88 = vmul.f32 %v82, %v87
    %vm89 = vcmask 254976
    %v90 = vsel %vm89, %v88, 0.0
    %91 = vadd.xlane.f32.xlu0 %v90
    %v92 = vpop.xlane.xlu0 %91
    %v93 = vlaneseq
    %v94 = vshrl.u32 %v93, 7
    %v95 = vsub.s32 2, %v94
    %v96 = vrot.slane %v83, %v95
    %v97 = vmul.f32 %v82, %v96
    %v98 = vlaneseq
    %v99 = vshrl.u32 %v98, 7
    %v100 = vsub.s32 1, %v99
    %v101 = vrot.slane %v83, %v100
    %v102 = vadd.f32 %v101, %v97
    %v105 = vunpack.c.l.s4 1966171168
    %v106 = vunpack.c.0.s8 %v105
    %v107 = vlaneseq
    %v108 = vshrl.u32 %v107, 7
    %v109 = vsub.s32 %v106, %v108
    %v110 = vrot.slane %v102, %v109
    %v111 = vcombine.high %v110, %v110
    %v113 = vunpack.c.l.s4 1966171168
    %v114 = vunpack.c.0.s8 %v113
    %v115 = vlaneseq
    %v116 = vshrl.u32 %v115, 7
    %v117 = vsub.s32 %v114, %v116
    %v118 = vrot.slane %v110, %v117
    %v120 = vunpack.c.l.s4 1966171168
    %v121 = vunpack.c.0.s8 %v120
    %v122 = vlaneseq
    %v123 = vshrl.u32 %v122, 7
    %v124 = vsub.s32 %v121, %v123
    %v125 = vrot.slane %v111, %v124
    %v126 = vlaneseq
    %v127 = vshrl.u32 %v126, 7
    %v128 = vsub.s32 0, %v127
    %v129 = vrot.slane %v118, %v128
    %v130 = vlaneseq
    %v131 = vshrl.u32 %v130, 7
    %v132 = vsub.s32 0, %v131
    %v133 = vrot.slane %v125, %v132
    %v136 = vmul.f32 %v80, %v129
    %v137 = vmul.f32 %v81, %v133
    %vm138 = vcmask 261120
    %v139 = vsel %vm138, %v136, 0.0
    %140 = vadd.xlane.f32.xlu0 %v139
    %v141 = vpop.xlane.xlu0 %140
    %v142 = vsel %vm138, %v137, 0.0
    %143 = vadd.xlane.f32.xlu0 %v142
    %v144 = vpop.xlane.xlu0 %143
    %v147 = vlaneseq
    %v148 = vand.u32 %v147, 127
    %v149 = vlaneseq
    %v150 = vshrl.u32 %v149, 7
    %v151 = vsub.s32 %v148, %v150
    %v152 = vrot.slane %v141, %v151
    %v153 = vlaneseq
    %v154 = vshrl.u32 %v153, 7
    %v155 = vsub.s32 %v148, %v154
    %v156 = vrot.slane %v144, %v155
    %vm157 = vcmask 1041409
    %v158 = vsel %vm157, %v156, %v152
    %v160 = vadd.f32 %v92, %v158
    %v161 = vld [vmem:[%s2] sm:$0x3]
    %vm162 = vcmp.ne.f32.partialorder %v161, 0.0
    %v163 = vsel %vm162, -1e+12, %v160
    %vm164 = vcmask 58368
    %v165 = vsel %vm164, %v163, -inf
    %166 = vmax.xlane.f32.xlu0 %v165
    %v167 = vpop.xlane.xlu0 %166
    %v168 = vsub.f32 %v163, %v167
    %v169 = vmul.f32 %v168, 1.442695
    %v170 = vpow.pop %v169
    %v171 = vsel %vm164, %v170, 0.0
    %172 = vadd.xlane.f32.xlu0 %v171
    %v173 = vpop.xlane.xlu0 %172
    %v174 = vrcp.pop %v173
    %v175 = vmul.f32 %v173, %v174
    %v176 = vsub.f32 2.0, %v175
    %v177 = vmul.f32 %v174, %v176
    %v178 = vmul.f32 %v170, %v177
    %179 = vst.msk [vmem:[#allocation11] sm:$0x3] %vm164, %v178
    %v182 = vunpack.c.l.s4 1966171168
    %v183 = vunpack.c.0.s8 %v182
    %v184 = vlaneseq
    %v185 = vshrl.u32 %v184, 7
    %v186 = vsub.s32 %v183, %v185
    %v187 = vrot.slane %v178, %v186
    %v188 = vcombine.high %v187, %v187
    %v190 = vunpack.c.l.s4 1966171168
    %v191 = vunpack.c.0.s8 %v190
    %v192 = vlaneseq
    %v193 = vshrl.u32 %v192, 7
    %v194 = vsub.s32 %v191, %v193
    %v195 = vrot.slane %v187, %v194
    %v197 = vunpack.c.l.s4 1966171168
    %v198 = vunpack.c.0.s8 %v197
    %v199 = vlaneseq
    %v200 = vshrl.u32 %v199, 7
    %v201 = vsub.s32 %v198, %v200
    %v202 = vrot.slane %v188, %v201
    %vm203 = vcmask 64512
    %v204 = vsel %vm203, %v195, 0
    %206 = vmatprep.subr.mxu0 0.0
    %207 = vmatpush1.msra.mxu0 %v80
    %208 = vmatprep.subr.mxu0 0.0
    %209 = vmatpush1.msra.mxu0 0.0
    %210 = vmatprep.subr.mxu0 0.0
    %211 = vmatpush1.msra.mxu0 0.0
    %212 = vmatprep.subr.mxu0 0.0
    %213 = vmatpush1.msra.mxu0 0.0
    %214 = vmatprep.subr.mxu0 0.0
    %215 = vmatpush1.msra.mxu0 0.0
    %216 = vmatprep.subr.mxu0 0.0
    %217 = vmatpush1.msra.mxu0 0.0
    %218 = vmatprep.subr.mxu0 0.0
    %219 = vmatpush1.msra.mxu0 0.0
    %220 = vmatprep.subr.mxu0 0.0
    %221 = vmatpush1.msra.mxu0 0.0
    %222 = vmatprep.subr.mxu0 0.0
    %223 = vmatpush1.msra.mxu0 0.0
    %224 = vmatprep.subr.mxu0 0.0
    %225 = vmatpush1.msra.mxu0 0.0
    %226 = vmatprep.subr.mxu0 0.0
    %227 = vmatpush1.msra.mxu0 0.0
    %228 = vmatprep.subr.mxu0 0.0
    %229 = vmatpush1.msra.mxu0 0.0
    %230 = vmatprep.subr.mxu0 0.0
    %231 = vmatpush1.msra.mxu0 0.0
    %232 = vmatprep.subr.mxu0 0.0
    %233 = vmatpush1.msra.mxu0 0.0
    %234 = vmatprep.subr.mxu0 0.0
    %235 = vmatpush1.msra.mxu0 0.0
    %236 = vmatprep.subr.mxu0 0.0
    %237 = vmatpush1.msra.mxu0 0.0
    %238 = vmatprep.subr.mxu0 0.0
    %239 = vmatpush1.msra.mxu0 0.0
    %240 = vmatprep.subr.mxu0 0.0
    %241 = vmatpush1.msra.mxu0 0.0
    %242 = vmatprep.subr.mxu0 0.0
    %243 = vmatpush1.msra.mxu0 0.0
    %244 = vmatprep.subr.mxu0 0.0
    %245 = vmatpush1.msra.mxu0 0.0
    %246 = vmatprep.subr.mxu0 0.0
    %247 = vmatpush1.msra.mxu0 0.0
    %248 = vmatprep.subr.mxu0 0.0
    %249 = vmatpush1.msra.mxu0 0.0
    %250 = vmatprep.subr.mxu0 0.0
    %251 = vmatpush1.msra.mxu0 0.0
    %252 = vmatprep.subr.mxu0 0.0
    %253 = vmatpush1.msra.mxu0 0.0
    %254 = vmatprep.subr.mxu0 0.0
    %255 = vmatpush1.msra.mxu0 0.0
    %256 = vmatprep.subr.mxu0 0.0
    %257 = vmatpush1.msra.mxu0 0.0
    %258 = vmatprep.subr.mxu0 0.0
    %259 = vmatpush1.msra.mxu0 0.0
    %260 = vmatprep.subr.mxu0 0.0
    %261 = vmatpush1.msra.mxu0 0.0
    %262 = vmatprep.subr.mxu0 0.0
    %263 = vmatpush1.msra.mxu0 0.0
    %264 = vmatprep.subr.mxu0 0.0
    %265 = vmatpush1.msra.mxu0 0.0
    %266 = vmatprep.subr.mxu0 0.0
    %267 = vmatpush1.msra.mxu0 0.0
    %268 = vmatprep.subr.mxu0 0.0
    %269 = vmatpush1.msra.mxu0 0.0
    %270 = vmatprep.mubr.f32.mxu0 0.0
    %271 = vmatmul.mubr.f32.gmra.mrb[0].mxu0 %v204
    %v272 = vpop.f32.mrb[0].mxu0
    %v273 = vadd.f32 0.0, %v272
    %v274 = vpop.f32.mrb[0].mxu0
    %275 = vdwg.mxu0
    %v276 = vsel %vm203, %v202, 0
    %278 = vmatprep.subr.mxu0 0.0
    %279 = vmatpush1.msra.mxu0 %v81
    %280 = vmatprep.subr.mxu0 0.0
    %281 = vmatpush1.msra.mxu0 0.0
    %282 = vmatprep.subr.mxu0 0.0
    %283 = vmatpush1.msra.mxu0 0.0
    %284 = vmatprep.subr.mxu0 0.0
    %285 = vmatpush1.msra.mxu0 0.0
    %286 = vmatprep.subr.mxu0 0.0
    %287 = vmatpush1.msra.mxu0 0.0
    %288 = vmatprep.subr.mxu0 0.0
    %289 = vmatpush1.msra.mxu0 0.0
    %290 = vmatprep.subr.mxu0 0.0
    %291 = vmatpush1.msra.mxu0 0.0
    %292 = vmatprep.subr.mxu0 0.0
    %293 = vmatpush1.msra.mxu0 0.0
    %294 = vmatprep.subr.mxu0 0.0
    %295 = vmatpush1.msra.mxu0 0.0
    %296 = vmatprep.subr.mxu0 0.0
    %297 = vmatpush1.msra.mxu0 0.0
    %298 = vmatprep.subr.mxu0 0.0
    %299 = vmatpush1.msra.mxu0 0.0
    %300 = vmatprep.subr.mxu0 0.0
    %301 = vmatpush1.msra.mxu0 0.0
    %302 = vmatprep.subr.mxu0 0.0
    %303 = vmatpush1.msra.mxu0 0.0
    %304 = vmatprep.subr.mxu0 0.0
    %305 = vmatpush1.msra.mxu0 0.0
    %306 = vmatprep.subr.mxu0 0.0
    %307 = vmatpush1.msra.mxu0 0.0
    %308 = vmatprep.subr.mxu0 0.0
    %309 = vmatpush1.msra.mxu0 0.0
    %310 = vmatprep.subr.mxu0 0.0
    %311 = vmatpush1.msra.mxu0 0.0
    %312 = vmatprep.subr.mxu0 0.0
    %313 = vmatpush1.msra.mxu0 0.0
    %314 = vmatprep.subr.mxu0 0.0
    %315 = vmatpush1.msra.mxu0 0.0
    %316 = vmatprep.subr.mxu0 0.0
    %317 = vmatpush1.msra.mxu0 0.0
    %318 = vmatprep.subr.mxu0 0.0
    %319 = vmatpush1.msra.mxu0 0.0
    %320 = vmatprep.subr.mxu0 0.0
    %321 = vmatpush1.msra.mxu0 0.0
    %322 = vmatprep.subr.mxu0 0.0
    %323 = vmatpush1.msra.mxu0 0.0
    %324 = vmatprep.subr.mxu0 0.0
    %325 = vmatpush1.msra.mxu0 0.0
    %326 = vmatprep.subr.mxu0 0.0
    %327 = vmatpush1.msra.mxu0 0.0
    %328 = vmatprep.subr.mxu0 0.0
    %329 = vmatpush1.msra.mxu0 0.0
    %330 = vmatprep.subr.mxu0 0.0
    %331 = vmatpush1.msra.mxu0 0.0
    %332 = vmatprep.subr.mxu0 0.0
    %333 = vmatpush1.msra.mxu0 0.0
    %334 = vmatprep.subr.mxu0 0.0
    %335 = vmatpush1.msra.mxu0 0.0
    %336 = vmatprep.subr.mxu0 0.0
    %337 = vmatpush1.msra.mxu0 0.0
    %338 = vmatprep.subr.mxu0 0.0
    %339 = vmatpush1.msra.mxu0 0.0
    %340 = vmatprep.subr.mxu0 0.0
    %341 = vmatpush1.msra.mxu0 0.0
    %342 = vmatprep.mubr.f32.mxu0 0.0
    %343 = vmatmul.mubr.f32.gmra.mrb[0].mxu0 %v276
    %v344 = vpop.f32.mrb[0].mxu0
    %v345 = vadd.f32 0.0, %v344
    %v346 = vpop.f32.mrb[0].mxu0
    %347 = vdwg.mxu0
    %v348 = vld [vmem:[#allocation7] sm:$0xff]
    %v349 = vld [vmem:[#allocation7 + $0x8] sm:$0xff]
    %v350 = vld [vmem:[#allocation7 + $0x10] sm:$0xff]
    %v351 = vld [vmem:[#allocation7 + $0x18] sm:$0xff]
    %v352 = vld [vmem:[#allocation8] sm:$0xff]
    %v353 = vld [vmem:[#allocation8 + $0x8] sm:$0xff]
    %v354 = vld [vmem:[#allocation8 + $0x10] sm:$0xff]
    %v355 = vld [vmem:[#allocation8 + $0x18] sm:$0xff]
    %v357 = vsel %vm138, %v82, 0
    %359 = vmatprep.subr.mxu0 0.0
    %360 = vmatpush1.msra.mxu0 %v352
    %361 = vmatprep.subr.mxu0 0.0
    %362 = vmatpush1.msra.mxu0 %v353
    %363 = vmatprep.subr.mxu0 0.0
    %364 = vmatpush1.msra.mxu0 %v354
    %365 = vmatprep.subr.mxu0 0.0
    %366 = vmatpush1.msra.mxu0 %v355
    %367 = vmatprep.subr.mxu0 0.0
    %368 = vmatpush1.msra.mxu0 0.0
    %369 = vmatprep.subr.mxu0 0.0
    %370 = vmatpush1.msra.mxu0 0.0
    %371 = vmatprep.subr.mxu0 0.0
    %372 = vmatpush1.msra.mxu0 0.0
    %373 = vmatprep.subr.mxu0 0.0
    %374 = vmatpush1.msra.mxu0 0.0
    %375 = vmatprep.subr.mxu0 0.0
    %376 = vmatpush1.msra.mxu0 0.0
    %377 = vmatprep.subr.mxu0 0.0
    %378 = vmatpush1.msra.mxu0 0.0
    %379 = vmatprep.subr.mxu0 0.0
    %380 = vmatpush1.msra.mxu0 0.0
    %381 = vmatprep.subr.mxu0 0.0
    %382 = vmatpush1.msra.mxu0 0.0
    %383 = vmatprep.subr.mxu0 0.0
    %384 = vmatpush1.msra.mxu0 0.0
    %385 = vmatprep.subr.mxu0 0.0
    %386 = vmatpush1.msra.mxu0 0.0
    %387 = vmatprep.subr.mxu0 0.0
    %388 = vmatpush1.msra.mxu0 0.0
    %389 = vmatprep.subr.mxu0 0.0
    %390 = vmatpush1.msra.mxu0 0.0
    %391 = vmatprep.subr.mxu0 0.0
    %392 = vmatpush1.msra.mxu0 0.0
    %393 = vmatprep.subr.mxu0 0.0
    %394 = vmatpush1.msra.mxu0 0.0
    %395 = vmatprep.subr.mxu0 0.0
    %396 = vmatpush1.msra.mxu0 0.0
    %397 = vmatprep.subr.mxu0 0.0
    %398 = vmatpush1.msra.mxu0 0.0
    %399 = vmatprep.subr.mxu0 0.0
    %400 = vmatpush1.msra.mxu0 0.0
    %401 = vmatprep.subr.mxu0 0.0
    %402 = vmatpush1.msra.mxu0 0.0
    %403 = vmatprep.subr.mxu0 0.0
    %404 = vmatpush1.msra.mxu0 0.0
    %405 = vmatprep.subr.mxu0 0.0
    %406 = vmatpush1.msra.mxu0 0.0
    %407 = vmatprep.subr.mxu0 0.0
    %408 = vmatpush1.msra.mxu0 0.0
    %409 = vmatprep.subr.mxu0 0.0
    %410 = vmatpush1.msra.mxu0 0.0
    %411 = vmatprep.subr.mxu0 0.0
    %412 = vmatpush1.msra.mxu0 0.0
    %413 = vmatprep.subr.mxu0 0.0
    %414 = vmatpush1.msra.mxu0 0.0
    %415 = vmatprep.subr.mxu0 0.0
    %416 = vmatpush1.msra.mxu0 0.0
    %417 = vmatprep.subr.mxu0 0.0
    %418 = vmatpush1.msra.mxu0 0.0
    %419 = vmatprep.subr.mxu0 0.0
    %420 = vmatpush1.msra.mxu0 0.0
    %421 = vmatprep.subr.mxu0 0.0
    %422 = vmatpush1.msra.mxu0 0.0
    %423 = vmatprep.mubr.f32.mxu0 0.0
    %424 = vmatmul.mubr.f32.gmra.mrb[0].mxu0 %v357
    %v425 = vpop.f32.mrb[0].mxu0
    %v426 = vadd.f32 0.0, %v425
    %v427 = vpop.f32.mrb[0].mxu0
    %428 = vdwg.mxu0
    %v431 = vrot.slane %v345, 7
    %v432 = vsel %vm157, %v431, %v273
    %v433 = vsel %vm138, %v432, 0
    %435 = vmatprep.subr.mxu0 0.0
    %436 = vmatpush1.msra.mxu0 %v348
    %437 = vmatprep.subr.mxu0 0.0
    %438 = vmatpush1.msra.mxu0 %v349
    %439 = vmatprep.subr.mxu0 0.0
    %440 = vmatpush1.msra.mxu0 %v350
    %441 = vmatprep.subr.mxu0 0.0
    %442 = vmatpush1.msra.mxu0 %v351
    %443 = vmatprep.subr.mxu0 0.0
    %444 = vmatpush1.msra.mxu0 0.0
    %445 = vmatprep.subr.mxu0 0.0
    %446 = vmatpush1.msra.mxu0 0.0
    %447 = vmatprep.subr.mxu0 0.0
    %448 = vmatpush1.msra.mxu0 0.0
    %449 = vmatprep.subr.mxu0 0.0
    %450 = vmatpush1.msra.mxu0 0.0
    %451 = vmatprep.subr.mxu0 0.0
    %452 = vmatpush1.msra.mxu0 0.0
    %453 = vmatprep.subr.mxu0 0.0
    %454 = vmatpush1.msra.mxu0 0.0
    %455 = vmatprep.subr.mxu0 0.0
    %456 = vmatpush1.msra.mxu0 0.0
    %457 = vmatprep.subr.mxu0 0.0
    %458 = vmatpush1.msra.mxu0 0.0
    %459 = vmatprep.subr.mxu0 0.0
    %460 = vmatpush1.msra.mxu0 0.0
    %461 = vmatprep.subr.mxu0 0.0
    %462 = vmatpush1.msra.mxu0 0.0
    %463 = vmatprep.subr.mxu0 0.0
    %464 = vmatpush1.msra.mxu0 0.0
    %465 = vmatprep.subr.mxu0 0.0
    %466 = vmatpush1.msra.mxu0 0.0
    %467 = vmatprep.subr.mxu0 0.0
    %468 = vmatpush1.msra.mxu0 0.0
    %469 = vmatprep.subr.mxu0 0.0
    %470 = vmatpush1.msra.mxu0 0.0
    %471 = vmatprep.subr.mxu0 0.0
    %472 = vmatpush1.msra.mxu0 0.0
    %473 = vmatprep.subr.mxu0 0.0
    %474 = vmatpush1.msra.mxu0 0.0
    %475 = vmatprep.subr.mxu0 0.0
    %476 = vmatpush1.msra.mxu0 0.0
    %477 = vmatprep.subr.mxu0 0.0
    %478 = vmatpush1.msra.mxu0 0.0
    %479 = vmatprep.subr.mxu0 0.0
    %480 = vmatpush1.msra.mxu0 0.0
    %481 = vmatprep.subr.mxu0 0.0
    %482 = vmatpush1.msra.mxu0 0.0
    %483 = vmatprep.subr.mxu0 0.0
    %484 = vmatpush1.msra.mxu0 0.0
    %485 = vmatprep.subr.mxu0 0.0
    %486 = vmatpush1.msra.mxu0 0.0
    %487 = vmatprep.subr.mxu0 0.0
    %488 = vmatpush1.msra.mxu0 0.0
    %489 = vmatprep.subr.mxu0 0.0
    %490 = vmatpush1.msra.mxu0 0.0
    %491 = vmatprep.subr.mxu0 0.0
    %492 = vmatpush1.msra.mxu0 0.0
    %493 = vmatprep.subr.mxu0 0.0
    %494 = vmatpush1.msra.mxu0 0.0
    %495 = vmatprep.subr.mxu0 0.0
    %496 = vmatpush1.msra.mxu0 0.0
    %497 = vmatprep.subr.mxu0 0.0
    %498 = vmatpush1.msra.mxu0 0.0
    %499 = vmatprep.mubr.f32.mxu0 0.0
    %500 = vmatmul.mubr.f32.gmra.mrb[0].mxu0 %v433
    %v501 = vpop.f32.mrb[0].mxu0
    %v502 = vadd.f32 %v426, %v501
    %v503 = vpop.f32.mrb[0].mxu0
    %504 = vdwg.mxu0
    %v505 = vtanh.pop %v502
    %506 = vst.msk [vmem:[#allocation10] sm:$0x3] %vm89, %v505
    // Predicated region
    $region42: #{tpu_custom_call.1} parent=1 // pred_check
      _
    $region43: #{tpu_custom_call.1} parent=1 // pred_check_branch
      %508 = sbr.rel (0) target = $region45
    $region44: #{tpu_custom_call.1} parent=1 // pred_region
      %s510 = ssub.s32 32, 32
      %511 = vsyncadd [#allocation4], %s510
      %s513 = sshll.u32 [#allocation10], 4
      %s514 = int_to_ptr.vmem [resolvable:$true] %s513
      %516 = dma.vmem_to_hbm [thread:$0]  %s514, 32, %s6, [#allocation4]
    $region45: #{tpu_custom_call.1} parent=1 // pred_fallthru
      _
    // Predicated region
    $region46: #{tpu_custom_call.1} parent=1 // pred_check
      _
    $region47: #{tpu_custom_call.1} parent=1 // pred_check_branch
      %518 = sbr.rel (0) target = $region49
    $region48: #{tpu_custom_call.1} parent=1 // pred_region
      %s520 = ssub.s32 32, 32
      %521 = vsyncadd [#allocation12], %s520
      %s523 = sshll.u32 [#allocation11], 4
      %s524 = int_to_ptr.vmem [resolvable:$true] %s523
      %526 = dma.vmem_to_hbm [thread:$0]  %s524, 32, %s7, [#allocation12]
    $region49: #{tpu_custom_call.1} parent=1 // pred_fallthru
      _
    // Predicated region
    $region50: #{tpu_custom_call.1} parent=1 // pred_check
      _
    $region51: #{tpu_custom_call.1} parent=1 // pred_check_branch
      %528 = sbr.rel (0) target = $region53
    $region52: #{tpu_custom_call.1} parent=1 // pred_region
      %529 = dma.done [#allocation4], 32
    $region53: #{tpu_custom_call.1} parent=1 // pred_fallthru
      _
    // Predicated region
    $region54: #{tpu_custom_call.1} parent=1 // pred_check
      _
    $region55: #{tpu_custom_call.1} parent=1 // pred_check_branch
      %531 = sbr.rel (0) target = $region57
    $region56: #{tpu_custom_call.1} parent=1 // pred_region
      %532 = dma.done [#allocation12], 32
    $region57: #{tpu_custom_call.1} parent=1 // pred_fallthru
      _
    %533 = vsyncpa [#allocation3], 1
    %534 = vsyncpa [#allocation6], 1
    %535 = vsyncpa [#allocation9], 1
    %536 = vsyncpa [#allocation4], 1
    %537 = vsyncpa [#allocation12], 1

</llo_original>
